<compile_context>
chip_gen: v6e
topology: v6e:2x2x1
jax: 0.10.0
libtpu: 0.0.40
codegen_flags: <defaults>
</compile_context>

<pallas_src>
import functools

import jax
import jax.numpy as jnp
from jax.experimental import pallas as pl
from jax.experimental.pallas import tpu as pltpu

_LANES = 128


def _round_up(x, m):
    return ((x + m - 1) // m) * m


def _hinge_multiclass_kernel(x_ref, t_ref, out_ref, *, min_margin):
    """One grid step: (block_rows, 128) logits + int8 one-hot mask ->
    (1, 128) lane-dense partial sums of the element-wise hinge term."""
    x = x_ref[...].astype(jnp.float32)          # (block_rows, 128)
    pos = t_ref[...] != 0                       # int8 one-hot -> bool mask
    # hinge_embedding_loss: y == +1 -> x ; y == -1 -> max(0, margin - x)
    elem = jnp.where(pos, x, jnp.maximum(0.0, min_margin - x))
    # Reduce over sublanes only; lanes stay vectorized. Full reduce is done
    # once in the wrapper on the small (grid, 128) partials array.
    out_ref[...] = jnp.sum(elem, axis=0, keepdims=True)


def hinge_multiclass_loss(inputs, targets, min_margin=1.0, preferred_rows=1024):
    """Pallas TPU implementation of deel.torchlip HingeMulticlassLoss.forward.

    Args:
      inputs:  (B, C) float array of logits.
      targets: (B, C) one-hot (0/1) array.
      min_margin: minimal margin to enforce.
    Returns:
      scalar float32, mean element-wise hinge term.
    """
    B, C = inputs.shape
    assert targets.shape == (B, C)
    n = B * C

    # Lane-dense tiling: flatten to (total_rows, 128). block_rows is a multiple
    # of 32 (safe sublane tiling for int8/bf16 streams too) and capped at
    # preferred_rows (1024 -> ~512 KiB f32 + ~128 KiB int8 per tile, well under
    # the v7x 32 MiB scoped-VMEM budget even with double-buffering).
    rows_needed = pl.cdiv(n, _LANES)
    if rows_needed <= preferred_rows:
        block_rows = max(32, _round_up(rows_needed, 32))
        total_rows = block_rows
    else:
        block_rows = preferred_rows
        total_rows = _round_up(rows_needed, block_rows)
    num_blocks = total_rows // block_rows
    padded = total_rows * _LANES

    # Pad inputs with 0 and targets with 1: padded elements hit the y==+1
    # branch and contribute exactly 0 to the sum (no extra mask stream needed).
    x_flat = jnp.pad(inputs.reshape(-1), (0, padded - n), constant_values=0)
    x2d = x_flat.reshape(total_rows, _LANES)
    t_flat = jnp.pad((targets != 0).reshape(-1), (0, padded - n),
                     constant_values=True)
    t2d = t_flat.astype(jnp.int8).reshape(total_rows, _LANES)

    kernel = functools.partial(_hinge_multiclass_kernel,
                               min_margin=float(min_margin))

    bytes_accessed = (x2d.size * x2d.dtype.itemsize
                      + t2d.size * t2d.dtype.itemsize
                      + num_blocks * _LANES * 4)

    partials = pl.pallas_call(
        kernel,
        out_shape=jax.ShapeDtypeStruct((num_blocks, _LANES), jnp.float32),
        grid_spec=pltpu.PrefetchScalarGridSpec(
            num_scalar_prefetch=0,
            grid=(num_blocks,),
            in_specs=[
                pl.BlockSpec((block_rows, _LANES), lambda i: (i, 0)),
                pl.BlockSpec((block_rows, _LANES), lambda i: (i, 0)),
            ],
            out_specs=pl.BlockSpec((1, _LANES), lambda i: (i, 0)),
        ),
        compiler_params=pltpu.CompilerParams(
            # Each grid step owns its own output row -> fully parallel
            # (lets both v7x TensorCores stream HBM).
            dimension_semantics=("parallel",),
        ),
        cost_estimate=pl.CostEstimate(
            flops=3 * padded,
            transcendentals=0,
            bytes_accessed=bytes_accessed,
        ),
    )(x2d, t2d)

    # Tiny final reduce + mean over the ORIGINAL element count.
    return jnp.sum(partials) / jnp.float32(n)


def _reference(inputs, targets, min_margin=1.0):
    x = inputs.astype(jnp.float32)
    y = 2.0 * targets.astype(jnp.float32) - 1.0
    elem = jnp.where(y > 0.0, x, jnp.maximum(0.0, min_margin - x))
    return jnp.mean(elem)


if __name__ == "__main__":
    key = jax.random.PRNGKey(0)
    k_in, k_lbl = jax.random.split(key)

    B, C = 16, 10               # batch=16, num_classes=10
    min_margin = 1.0            # module default

    inputs = jax.random.normal(k_in, (B, C), dtype=jnp.float32)
    labels = jax.random.randint(k_lbl, (B,), 0, C)
    targets = jax.nn.one_hot(labels, C, dtype=jnp.float32)  # one-hot, as required

    out = hinge_multiclass_loss(inputs, targets, min_margin=min_margin)
    out = jax.block_until_ready(out)

    ref = _reference(inputs, targets, min_margin=min_margin)
    assert jnp.allclose(out, ref, atol=1e-5, rtol=1e-5), (out, ref)

    print("KERNEL_OK")
</pallas_src>

<mosaic_0001>
module attributes {stable_mosaic.version = 11 : i64} {
  func.func @_hinge_multiclass_kernel(%arg0: i32, %arg1: memref<32x128xf32, #tpu.memory_space<vmem>>, %arg2: memref<32x128xi8, #tpu.memory_space<vmem>>, %arg3: memref<1x128xf32, #tpu.memory_space<vmem>>) attributes {dimension_semantics = [#tpu.dimension_semantics<parallel>], iteration_bounds = array<i64: 1>, scalar_prefetch = 0 : i64, scratch_operands = 0 : i64, tpu.core_type = #tpu.core_type<tc>, window_params = [{transform_indices = @transform_0, window_bounds = array<i64: 32, 128>}, {transform_indices = @transform_1, window_bounds = array<i64: 32, 128>}, {transform_indices = @transform_2, window_bounds = array<i64: 1, 128>}]} {
    %c0 = arith.constant 0 : index
    %c0_0 = arith.constant 0 : index
    %0 = vector.load %arg1[%c0, %c0_0] : memref<32x128xf32, #tpu.memory_space<vmem>>, vector<32x128xf32>
    %c0_1 = arith.constant 0 : index
    %c0_2 = arith.constant 0 : index
    %1 = vector.load %arg2[%c0_1, %c0_2] : memref<32x128xi8, #tpu.memory_space<vmem>>, vector<32x128xi8>
    %c0_i8 = arith.constant 0 : i8
    %2 = vector.broadcast %c0_i8 : i8 to vector<32x128xi8>
    %3 = arith.cmpi ne, %1, %2 : vector<32x128xi8>
    %cst = arith.constant 1.000000e+00 : f32
    %4 = vector.broadcast %cst : f32 to vector<32x128xf32>
    %5 = arith.subf %4, %0 : vector<32x128xf32>
    %cst_3 = arith.constant 0.000000e+00 : f32
    %6 = vector.broadcast %cst_3 : f32 to vector<32x128xf32>
    %7 = arith.maximumf %6, %5 : vector<32x128xf32>
    %8 = arith.select %3, %0, %7 : vector<32x128xi1>, vector<32x128xf32>
    %cst_4 = arith.constant dense<0.000000e+00> : vector<128xf32>
    %9 = vector.multi_reduction <add>, %8, %cst_4 [0] : vector<32x128xf32> to vector<128xf32>
    %10 = vector.shape_cast %9 : vector<128xf32> to vector<1x128xf32>
    %c0_5 = arith.constant 0 : index
    %c0_6 = arith.constant 0 : index
    %11 = vector.load %arg3[%c0_5, %c0_6] : memref<1x128xf32, #tpu.memory_space<vmem>>, vector<1x128xf32>
    tpu.vector_store %arg3[%c0_5, %c0_6], %10 {strides = array<i32>} : memref<1x128xf32, #tpu.memory_space<vmem>>, vector<1x128xf32>,
    return
  }
  func.func @transform_0(%arg0: i32) -> (i32, i32) {
    %c0_i32 = arith.constant 0 : i32
    %c0_i32_0 = arith.constant 0 : i32
    return %arg0, %c0_i32 : i32, i32
  }
  func.func @transform_1(%arg0: i32) -> (i32, i32) {
    %c0_i32 = arith.constant 0 : i32
    %c0_i32_0 = arith.constant 0 : i32
    return %arg0, %c0_i32 : i32, i32
  }
  func.func @transform_2(%arg0: i32) -> (i32, i32) {
    %c0_i32 = arith.constant 0 : i32
    %c0_i32_0 = arith.constant 0 : i32
    return %arg0, %c0_i32 : i32, i32
  }
}

</mosaic_0001>

<llo_original>
// kernel: tpu_custom_call.1
$region0: #{tpu_custom_call.1}
  #allocation0 [shape = 'u32[]', space=smem, size = 0x4, offset = 0x4, fixed_abs, tag = 'smem constant byte address 0x4 - core index']
  #allocation1 [shape = 'u32[144,128]{1,0:T(1,128)}', space=vmem, size = 0x12000, scoped, tag = 'internal scratch']
  %s0 = inlined_call_operand.hbm [shape: f32[32,128], index: 0, kind: input, shape index: {}]
  %s1 = inlined_call_operand.hbm [shape: s8[32,128], index: 1, kind: input, shape index: {}]
  %s2 = inlined_call_operand.hbm [shape: f32[1,128], index: 2, kind: output, shape index: {}]
  %s3 = sld [smem:[#allocation0]]
  $region26: #{tpu_custom_call.1} parent=0
    _
  %s5 = ssub.s32 1, %s3
  %s6 = scalar_select 0, %s5, %s3
  $region1: #{tpu_custom_call.1} parent=0
    #allocation2 [shape = 'u8[16384]{0}', space=vmem, size = 0x4000, scoped, tag = 'input window, operand 0, single buffered']
    #allocation3 [shape = 's32[1]{0}', space=sflag, size = 0x4, scoped, tag = 'scoped memory for tpu_custom_call.1']
    #allocation4 [shape = 's32[1]{0}', space=sflag, size = 0x4, scoped, tag = 'scoped memory for tpu_custom_call.1']
    #allocation5 [shape = 'u8[4096]{0}', space=vmem, size = 0x1000, scoped, tag = 'input window, operand 1, single buffered']
    #allocation6 [shape = 's32[1]{0}', space=sflag, size = 0x4, scoped, tag = 'scoped memory for tpu_custom_call.1']
    #allocation7 [shape = 'u8[512]{0}', space=vmem, size = 0x400, scoped, tag = 'output window, operand 0, single buffered']
    %7 = vsyncpa [#allocation3], 0
    %8 = vsyncpa [#allocation6], 0
    %9 = vsyncpa [#allocation4], 0
    // Predicated region
    $region2: #{tpu_custom_call.1} parent=1 // pred_check
      _
    $region3: #{tpu_custom_call.1} parent=1 // pred_check_branch
      %11 = sbr.rel (0) target = $region5
    $region4: #{tpu_custom_call.1} parent=1 // pred_region
      %s13 = ssub.s32 512, 512
      %14 = vsyncadd [#allocation3], %s13
      %s15 = sshll.u32 [#allocation2], 4
      %s16 = int_to_ptr.vmem [resolvable:$true] %s15
      %21 = dma.hbm_to_vmem [thread:$0]  %s0, 512, %s16, [#allocation3], 128, 128, 8
    $region5: #{tpu_custom_call.1} parent=1 // pred_fallthru
      _
    // Predicated region
    $region6: #{tpu_custom_call.1} parent=1 // pred_check
      _
    $region7: #{tpu_custom_call.1} parent=1 // pred_check_branch
      %23 = sbr.rel (0) target = $region9
    $region8: #{tpu_custom_call.1} parent=1 // pred_region
      %s25 = ssub.s32 128, 128
      %26 = vsyncadd [#allocation6], %s25
      %s28 = sshll.u32 [#allocation5], 4
      %s29 = int_to_ptr.vmem [resolvable:$true] %s28
      %31 = dma.hbm_to_vmem [thread:$0]  %s1, 128, %s29, [#allocation6]
    $region9: #{tpu_custom_call.1} parent=1 // pred_fallthru
      _
    // Predicated region
    $region10: #{tpu_custom_call.1} parent=1 // pred_check
      _
    $region11: #{tpu_custom_call.1} parent=1 // pred_check_branch
      %33 = sbr.rel (0) target = $region13
    $region12: #{tpu_custom_call.1} parent=1 // pred_region
      %34 = dma.done [#allocation3], 512
    $region13: #{tpu_custom_call.1} parent=1 // pred_fallthru
      _
    // Predicated region
    $region14: #{tpu_custom_call.1} parent=1 // pred_check
      _
    $region15: #{tpu_custom_call.1} parent=1 // pred_check_branch
      %36 = sbr.rel (0) target = $region17
    $region16: #{tpu_custom_call.1} parent=1 // pred_region
      %37 = dma.done [#allocation6], 128
    $region17: #{tpu_custom_call.1} parent=1 // pred_fallthru
      _
    %v40 = vld [vmem:[#allocation2] sm:$0xff]
    %v41 = vld [vmem:[#allocation2 + $0x8] sm:$0xff]
    %v42 = vld [vmem:[#allocation2 + $0x10] sm:$0xff]
    %v43 = vld [vmem:[#allocation2 + $0x18] sm:$0xff]
    %v44 = vld [vmem:[#allocation5] sm:$0xff]
    %vm45 = vnez %v44
    %v46 = vsub.f32 1.0, %v40
    %v47 = vsub.f32 1.0, %v41
    %v48 = vsub.f32 1.0, %v42
    %v49 = vsub.f32 1.0, %v43
    %v50 = vmax.f32 %v46, 0.0
    %v51 = vmax.f32 %v47, 0.0
    %v52 = vmax.f32 %v48, 0.0
    %v53 = vmax.f32 %v49, 0.0
    %v54 = vsel %vm45, 16843009, 0
    %v55 = vunpack.c.0.s8 %v54
    %v56 = vunpack.c.1.s8 %v54
    %v57 = vunpack.c.2.s8 %v54
    %v58 = vunpack.c.3.s8 %v54
    %v59 = vpack.c.b16 %v55, %v55
    %v60 = vpack.c.b8 %v59, %v59
    %v61 = vpack.c.b16 %v56, %v56
    %v62 = vpack.c.b8 %v61, %v61
    %v63 = vpack.c.b16 %v57, %v57
    %v64 = vpack.c.b8 %v63, %v63
    %v65 = vpack.c.b16 %v58, %v58
    %v66 = vpack.c.b8 %v65, %v65
    %vm67 = vnez %v60
    %vm68 = vnez %v62
    %vm69 = vnez %v64
    %vm70 = vnez %v66
    %v71 = vsel %vm67, 16843009, 0
    %v72 = vsel %vm68, 16843009, 0
    %v73 = vsel %vm69, 16843009, 0
    %v74 = vsel %vm70, 16843009, 0
    %v75 = vunpack.c.0.s8 %v71
    %v76 = vunpack.c.0.s8 %v72
    %v77 = vunpack.c.0.s8 %v73
    %v78 = vunpack.c.0.s8 %v74
    %vm79 = vcmp.ne.s32.totalorder %v75, 0
    %vm80 = vcmp.ne.s32.totalorder %v76, 0
    %vm81 = vcmp.ne.s32.totalorder %v77, 0
    %vm82 = vcmp.ne.s32.totalorder %v78, 0
    %v83 = vsel %vm79, %v40, %v50
    %v84 = vsel %vm80, %v41, %v51
    %v85 = vsel %vm81, %v42, %v52
    %v86 = vsel %vm82, %v43, %v53
    %v87 = vadd.f32 %v83, %v84
    %v88 = vadd.f32 %v87, %v85
    %v89 = vadd.f32 %v88, %v86
    %v90 = vrot.slane %v89, 4
    %v91 = vadd.f32 %v89, %v90
    %v92 = vrot.slane %v91, 2
    %v93 = vadd.f32 %v91, %v92
    %v94 = vrot.slane %v93, 1
    %v95 = vadd.f32 %v93, %v94
    %96 = vst [vmem:[#allocation7] sm:$0x1] %v95
    // Predicated region
    $region18: #{tpu_custom_call.1} parent=1 // pred_check
      _
    $region19: #{tpu_custom_call.1} parent=1 // pred_check_branch
      %98 = sbr.rel (0) target = $region21
    $region20: #{tpu_custom_call.1} parent=1 // pred_region
      %s100 = ssub.s32 16, 16
      %101 = vsyncadd [#allocation4], %s100
      %s103 = sshll.u32 [#allocation7], 4
      %s104 = int_to_ptr.vmem [resolvable:$true] %s103
      %106 = dma.vmem_to_hbm [thread:$0]  %s104, 16, %s2, [#allocation4]
    $region21: #{tpu_custom_call.1} parent=1 // pred_fallthru
      _
    // Predicated region
    $region22: #{tpu_custom_call.1} parent=1 // pred_check
      _
    $region23: #{tpu_custom_call.1} parent=1 // pred_check_branch
      %108 = sbr.rel (0) target = $region25
    $region24: #{tpu_custom_call.1} parent=1 // pred_region
      %109 = dma.done [#allocation4], 16
    $region25: #{tpu_custom_call.1} parent=1 // pred_fallthru
      _
    %110 = vsyncpa [#allocation3], 1
    %111 = vsyncpa [#allocation6], 1
    %112 = vsyncpa [#allocation4], 1

</llo_original>
